<compile_context>
chip_gen: v7x
topology: tpu7x:2x2x1
jax: 0.10.0
libtpu: 0.0.40
codegen_flags: <defaults>
</compile_context>

<pallas_src>
import jax
import jax.numpy as jnp
from jax.experimental import pallas as pl
from jax.experimental.pallas import tpu as pltpu


def linear_kernel(wb_ref, x_ref, o_ref):
    # wb_ref: SMEM (2,) f32           -- [weight, bias] of Linear(1, 1)
    # x_ref : VMEM (tile_r, lane_w)   -- lane-dense slab of the flat batch
    # o_ref : VMEM (tile_r, lane_w)
    w = wb_ref[0]
    b = wb_ref[1]
    o_ref[...] = (x_ref[...].astype(jnp.float32) * w + b).astype(o_ref.dtype)


def _default_tile_r():
    """Bigger tiles on v6e/v7x (32 MiB scoped-VMEM default); conservative elsewhere."""
    try:
        kind = jax.devices()[0].device_kind.lower()
    except Exception:  # pragma: no cover - device query should not be fatal
        kind = ""
    if "v6" in kind or "v7" in kind:
        return 1024  # 2 * 2 * 4 MiB = 16 MiB of pipeline buffers
    return 512       # 8 MiB total: safe under v5e's 16 MiB scoped default


def linear_regression_forward(x, weight, bias, *, tile_r=None, lane_w=1024):
    """y = x @ weight.T + bias for nn.Linear(1, 1): x (B, 1), weight (1, 1), bias (1,)."""
    orig_shape = x.shape
    flat = x.reshape(-1)
    n = flat.shape[0]

    itemsize = jnp.dtype(x.dtype).itemsize
    sublane = max(8, 32 // itemsize)  # sublane packing: 8 f32, 16 bf16, 32 int8/fp8

    if tile_r is None:
        tile_r = _default_tile_r()
    tile_r = max(sublane, pl.cdiv(tile_r, sublane) * sublane)

    if n <= tile_r * lane_w:
        # Small input: one minimal (sublane-aligned, 128-lane) tile.  The pad
        # copy here is tiny and keeps the block shape equal to the array shape.
        lane_w = 128
        rows = max(sublane, pl.cdiv(pl.cdiv(n, lane_w), sublane) * sublane)
        tile_r = rows
        padded = rows * lane_w
        need_unpad = padded != n
        x2d = (jnp.pad(flat, (0, padded - n)) if need_unpad else flat).reshape(
            rows, lane_w
        )
    else:
        rows = pl.cdiv(n, lane_w)
        padded = rows * lane_w
        need_unpad = padded != n
        if need_unpad:
            # Pad only up to the next lane_w multiple (small), not a full block.
            x2d = jnp.pad(flat, (0, padded - n)).reshape(rows, lane_w)
        else:
            # Free layout plumbing: contiguous buffer, plain reshape.
            x2d = flat.reshape(rows, lane_w)
        # Keep >=2 roughly balanced tiles so both v7x TensorCores get work.
        tile_r = min(tile_r, pl.cdiv(pl.cdiv(rows, 2), sublane) * sublane)

    grid = (pl.cdiv(rows, tile_r),)

    # Scalar params packed together; delivered to SMEM once via scalar prefetch.
    wb = jnp.concatenate([weight.reshape(-1), bias.reshape(-1)]).astype(jnp.float32)

    bytes_accessed = 2 * rows * lane_w * itemsize  # one read + one write pass

    out2d = pl.pallas_call(
        linear_kernel,
        out_shape=jax.ShapeDtypeStruct((rows, lane_w), x.dtype),
        grid_spec=pltpu.PrefetchScalarGridSpec(
            num_scalar_prefetch=1,  # wb -> SMEM before the grid runs
            grid=grid,
            in_specs=[
                pl.BlockSpec((tile_r, lane_w), lambda i, wb_ref: (i, 0)),
            ],
            out_specs=pl.BlockSpec((tile_r, lane_w), lambda i, wb_ref: (i, 0)),
        ),
        compiler_params=pltpu.CompilerParams(
            dimension_semantics=("parallel",),
        ),
        cost_estimate=pl.CostEstimate(
            flops=2 * rows * lane_w, transcendentals=0, bytes_accessed=bytes_accessed
        ),
        # Note: could add input_output_aliases={1: 0} to overwrite x2d in place
        # when the caller no longer needs x; left off to keep x intact.
    )(wb, x2d)

    if need_unpad:
        return out2d.reshape(-1)[:n].reshape(orig_shape)
    return out2d.reshape(orig_shape)


if __name__ == "__main__":
    key = jax.random.PRNGKey(0)

    # Deterministic parameters (shapes from torch.nn.Linear(1, 1)).
    weight = jnp.array([[0.75]], dtype=jnp.float32)  # (out=1, in=1)
    bias = jnp.array([-0.25], dtype=jnp.float32)     # (out=1,)

    # Small deterministic input batch: (batch=8, features=1) -> single tile.
    x = jax.random.normal(key, (8, 1), dtype=jnp.float32)
    y = linear_regression_forward(x, weight, bias)
    jax.block_until_ready(y)
    y_ref = x @ weight.T + bias
    assert y.shape == y_ref.shape, (y.shape, y_ref.shape)
    assert jnp.allclose(y, y_ref, atol=1e-6), (y, y_ref)

    # Lane-aligned multi-tile grid (no pad copy, no un-pad slice), grid = 2.
    x2 = jax.random.normal(jax.random.PRNGKey(1), (2048, 1), dtype=jnp.float32)
    y2 = linear_regression_forward(x2, weight, bias, tile_r=8, lane_w=128)
    jax.block_until_ready(y2)
    assert jnp.allclose(y2, x2 @ weight.T + bias, atol=1e-6)

    # Non-aligned batch: pad only to next lane_w multiple + masked partial tile.
    x3 = jax.random.normal(jax.random.PRNGKey(2), (1300, 1), dtype=jnp.float32)
    y3 = linear_regression_forward(x3, weight, bias, tile_r=8, lane_w=128)
    jax.block_until_ready(y3)
    assert jnp.allclose(y3, x3 @ weight.T + bias, atol=1e-6)

    print("KERNEL_OK")
</pallas_src>

<mosaic_0001>
module attributes {stable_mosaic.version = 11 : i64} {
  func.func @linear_kernel(%arg0: i32, %arg1: memref<2xf32, #tpu.memory_space<smem>>, %arg2: memref<8x128xf32, #tpu.memory_space<vmem>>, %arg3: memref<8x128xf32, #tpu.memory_space<vmem>>) attributes {dimension_semantics = [#tpu.dimension_semantics<parallel>], iteration_bounds = array<i64: 1>, scalar_prefetch = 1 : i64, scratch_operands = 0 : i64, tpu.core_type = #tpu.core_type<tc>, window_params = [{transform_indices = @transform_0, window_bounds = array<i64: 8, 128>}, {transform_indices = @transform_1, window_bounds = array<i64: 8, 128>}]} {
    %c0 = arith.constant 0 : index
    %0 = memref.load %arg1[%c0] : memref<2xf32, #tpu.memory_space<smem>>
    %c1 = arith.constant 1 : index
    %1 = memref.load %arg1[%c1] : memref<2xf32, #tpu.memory_space<smem>>
    %c0_0 = arith.constant 0 : index
    %c0_1 = arith.constant 0 : index
    %2 = vector.load %arg2[%c0_0, %c0_1] : memref<8x128xf32, #tpu.memory_space<vmem>>, vector<8x128xf32>
    %3 = vector.broadcast %0 : f32 to vector<8x128xf32>
    %4 = arith.mulf %2, %3 : vector<8x128xf32>
    %5 = vector.broadcast %1 : f32 to vector<8x128xf32>
    %6 = arith.addf %4, %5 : vector<8x128xf32>
    %c0_2 = arith.constant 0 : index
    %c0_3 = arith.constant 0 : index
    %7 = vector.load %arg3[%c0_2, %c0_3] : memref<8x128xf32, #tpu.memory_space<vmem>>, vector<8x128xf32>
    tpu.vector_store %arg3[%c0_2, %c0_3], %6 {strides = array<i32>} : memref<8x128xf32, #tpu.memory_space<vmem>>, vector<8x128xf32>,
    return
  }
  func.func @transform_0(%arg0: i32, %arg1: memref<2xf32, #tpu.memory_space<smem>>) -> (i32, i32) {
    %c0_i32 = arith.constant 0 : i32
    %c0_i32_0 = arith.constant 0 : i32
    return %arg0, %c0_i32 : i32, i32
  }
  func.func @transform_1(%arg0: i32, %arg1: memref<2xf32, #tpu.memory_space<smem>>) -> (i32, i32) {
    %c0_i32 = arith.constant 0 : i32
    %c0_i32_0 = arith.constant 0 : i32
    return %arg0, %c0_i32 : i32, i32
  }
}

</mosaic_0001>

<llo_original>
// kernel: tpu_custom_call.1
$region0: #{tpu_custom_call.1}
  #allocation0 [shape = 'u32[]', space=smem, size = 0x4, offset = 0x4, fixed_abs, tag = 'smem constant byte address 0x4 - core index']
  #allocation1 [shape = 'u32[144,128]{1,0:T(1,128)}', space=vmem, size = 0x12000, scoped, tag = 'internal scratch']
  #allocation2 [shape = 's32[1]{0}', space=sflag, size = 0x4, scoped, tag = 'scoped memory for tpu_custom_call.1']
  #allocation3 [shape = 'u8[512]{0}', space=smem, size = 0x200, scoped, tag = 'prefetched SMEM operand 0']
  %s0 = inlined_call_operand.hbm [shape: f32[2], index: 0, kind: input, shape index: {}]
  %s1 = inlined_call_operand.hbm [shape: f32[8,128], index: 1, kind: input, shape index: {}]
  %s2 = inlined_call_operand.hbm [shape: f32[8,128], index: 2, kind: output, shape index: {}]
  %s3 = sld [smem:[#allocation0]]
  $region18: #{tpu_custom_call.1} parent=0
    _
  %s5 = ssub.s32 1, %s3
  %s6 = scalar_select 0, %s5, %s3
  %8 = dma.hbm_to_smem %s0, 16, [#allocation3], [#allocation2]
  %9 = dma.done [#allocation2], 16
  %10 = sfence
  $region1: #{tpu_custom_call.1} parent=0
    #allocation4 [shape = 'u8[4096]{0}', space=vmem, size = 0x1000, scoped, tag = 'input window, operand 1, single buffered']
    #allocation5 [shape = 's32[1]{0}', space=sflag, size = 0x4, scoped, tag = 'scoped memory for tpu_custom_call.1']
    #allocation6 [shape = 's32[1]{0}', space=sflag, size = 0x4, scoped, tag = 'scoped memory for tpu_custom_call.1']
    #allocation7 [shape = 'u8[4096]{0}', space=vmem, size = 0x1000, scoped, tag = 'output window, operand 0, single buffered']
    %11 = vsyncpa [#allocation5], 0
    %12 = vsyncpa [#allocation6], 0
    // Predicated region
    $region2: #{tpu_custom_call.1} parent=1 // pred_check
      _
    $region3: #{tpu_custom_call.1} parent=1 // pred_check_branch
      %14 = sbr.rel (0) target = $region5
    $region4: #{tpu_custom_call.1} parent=1 // pred_region
      %s16 = ssub.s32 128, 128
      %17 = vsyncadd [#allocation5], %s16
      %s19 = sshll.u32 [#allocation4], 4
      %s20 = int_to_ptr.vmem [resolvable:$true] %s19
      %22 = dma.hbm_to_vmem [thread:$0]  %s1, 128, %s20, [#allocation5]
    $region5: #{tpu_custom_call.1} parent=1 // pred_fallthru
      _
    // Predicated region
    $region6: #{tpu_custom_call.1} parent=1 // pred_check
      _
    $region7: #{tpu_custom_call.1} parent=1 // pred_check_branch
      %24 = sbr.rel (0) target = $region9
    $region8: #{tpu_custom_call.1} parent=1 // pred_region
      %25 = dma.done [#allocation5], 128
    $region9: #{tpu_custom_call.1} parent=1 // pred_fallthru
      _
    %s26 = sld [smem:[#allocation3]]
    %s27 = sld [smem:[#allocation3 + $0x1]]
    %v28 = vld [vmem:[#allocation4] sm:$0xff]
    %v29 = vstv %s26
    %v30 = vmul.f32 %v28, %v29
    %v31 = vstv %s27
    %v32 = vadd.f32 %v30, %v31
    %33 = vst [vmem:[#allocation7] sm:$0xff] %v32
    // Predicated region
    $region10: #{tpu_custom_call.1} parent=1 // pred_check
      _
    $region11: #{tpu_custom_call.1} parent=1 // pred_check_branch
      %35 = sbr.rel (0) target = $region13
    $region12: #{tpu_custom_call.1} parent=1 // pred_region
      %s37 = ssub.s32 128, 128
      %38 = vsyncadd [#allocation6], %s37
      %s40 = sshll.u32 [#allocation7], 4
      %s41 = int_to_ptr.vmem [resolvable:$true] %s40
      %43 = dma.vmem_to_hbm [thread:$0]  %s41, 128, %s2, [#allocation6]
    $region13: #{tpu_custom_call.1} parent=1 // pred_fallthru
      _
    // Predicated region
    $region14: #{tpu_custom_call.1} parent=1 // pred_check
      _
    $region15: #{tpu_custom_call.1} parent=1 // pred_check_branch
      %45 = sbr.rel (0) target = $region17
    $region16: #{tpu_custom_call.1} parent=1 // pred_region
      %46 = dma.done [#allocation6], 128
    $region17: #{tpu_custom_call.1} parent=1 // pred_fallthru
      _
    %47 = vsyncpa [#allocation5], 1
    %48 = vsyncpa [#allocation6], 1

</llo_original>
